<compile_context>
chip_gen: v6e
topology: v6e:2x2x1
jax: 0.10.0
libtpu: 0.0.40
codegen_flags: <defaults>
</compile_context>

<pallas_src>
import math

import jax
import jax.numpy as jnp
import numpy as np
from jax.experimental import pallas as pl
from jax.experimental.pallas import tpu as pltpu


def cross_attention_kernel(x_ref, z_ref, wf1_ref, bf1_ref, wf2_ref, cvec_ref,
                           out_ref):
    b = pl.program_id(0)
    x = x_ref[0].astype(jnp.float32)            # (C, TN)  f32 math in-kernel
    C = x.shape[0]

    start = b * C
    if C % 8 == 0:                               # static (trace-time) check
        start = pl.multiple_of(start, 8)
    zcol = z_ref[pl.ds(start, C), :]             # (C, 1) per-batch z_linear(V)

    g1 = cvec_ref[:, 0:1]                        # (C, 1) packed tiny vectors
    be1 = cvec_ref[:, 1:2]
    bf2 = cvec_ref[:, 2:3]
    g2 = cvec_ref[:, 3:4]
    be2 = cvec_ref[:, 4:5]

    ones_row = jnp.ones((1, C), dtype=jnp.float32)
    inv_c = 1.0 / C

    def ln(v, gamma, beta, eps=1e-5):
        # single-pass LayerNorm over the channel axis; the two cross-sublane
        # sums go through the MXU ((1,C)@(C,TN)) instead of the XLU.
        s1 = jnp.dot(ones_row, v, preferred_element_type=jnp.float32)      # (1, TN)
        s2 = jnp.dot(ones_row, v * v, preferred_element_type=jnp.float32)  # (1, TN)
        mu = s1 * inv_c
        var = jnp.maximum(s2 * inv_c - mu * mu, 0.0)
        return (v - mu) * jax.lax.rsqrt(var + eps) * gamma + beta

    # Attention output == V broadcast (softmax over a singleton axis == 1);
    # z_linear already applied in the wrapper -> just add the per-batch column.
    z = ln(x + zcol, g1, be1)

    # feed forward, channels-first: y_cols = W @ x_cols (PyTorch (out,in)
    # weight layout used directly, no transposes).
    h = jnp.dot(wf1_ref[...], z, preferred_element_type=jnp.float32) + bf1_ref[...]
    h = jnp.maximum(h, 0.0)
    ff = jnp.dot(wf2_ref[...], h, preferred_element_type=jnp.float32) + bf2

    out_ref[0] = ln(ff + z, g2, be2).astype(out_ref.dtype)


def _pick_spatial_tile(n_pad, batch, channels, fsize, x_itemsize,
                       budget_bytes=6 * 1024 * 1024, cap=8192):
    """Largest 128-multiple divisor of n_pad within a per-step VMEM budget."""
    # rough per-lane-column working set:
    #   x double-buffer + out double-buffer (input dtype) + f32 intermediates
    per_col = (4 * channels * x_itemsize) + (2 * channels + fsize) * 4
    tn_budget = max(128, (budget_bytes // per_col) // 128 * 128)
    cap = min(cap, tn_budget)

    tn = 128
    t = 128
    while t <= min(n_pad, cap):
        if n_pad % t == 0:
            tn = t
        t += 128

    # keep at least 2 parallel grid steps when possible (v7x has 2 TensorCores)
    if batch * (n_pad // tn) < 2 and n_pad >= 256:
        half_cap = n_pad // 2
        t, tn2 = 128, 128
        while t <= half_cap:
            if n_pad % t == 0:
                tn2 = t
            t += 128
        tn = tn2
    return tn


def cross_attention_pallas(x_nchw, class_embedding, params):
    B, C, H, W = x_nchw.shape
    N = H * W
    fsize = params["wf1"].shape[0]

    # NCHW -> (B, C, N): pure reshape, stays channels-first, native dtype
    # (no forced f32 HBM traffic).
    x = x_nchw.reshape(B, C, N)

    # pad spatial axis up to a multiple of 128 -> lane-dense, unmasked stores.
    Np = ((N + 127) // 128) * 128
    if Np != N:
        x = jnp.pad(x, ((0, 0), (0, 0), (0, Np - N)))

    # Attention path collapses exactly (softmax over size-1 axis == 1):
    # each spatial position's Z equals V, so z_linear gives ONE row per batch.
    ce = class_embedding.astype(jnp.float32)
    v = ce @ params["wv"].T.astype(jnp.float32) + params["bv"].astype(jnp.float32)
    z_row = v @ params["wz"].T.astype(jnp.float32) + params["bz"].astype(jnp.float32)
    z_flat = z_row.reshape(B * C, 1).astype(jnp.float32)       # (B*C, 1)
    # NOTE: w_q / w_k never influence the output (softmax of a single logit
    # is 1 regardless), so they are intentionally not computed.

    # pack the tiny per-channel vectors into one slab (fewer DMA blocks).
    cvec = jnp.stack(
        [params["g1"], params["be1"], params["bf2"], params["g2"], params["be2"]],
        axis=1,
    ).astype(jnp.float32)                                      # (C, 5)
    bf1_col = params["bf1"][:, None].astype(jnp.float32)       # (fsize, 1)
    wf1 = params["wf1"].astype(jnp.float32)                    # (fsize, C)
    wf2 = params["wf2"].astype(jnp.float32)                    # (C, fsize)

    x_itemsize = jnp.dtype(x.dtype).itemsize
    TN = _pick_spatial_tile(Np, B, C, fsize, x_itemsize)
    grid = (B, Np // TN)

    out = pl.pallas_call(
        cross_attention_kernel,
        out_shape=jax.ShapeDtypeStruct((B, C, Np), x.dtype),
        grid_spec=pltpu.PrefetchScalarGridSpec(
            num_scalar_prefetch=0,
            grid=grid,
            in_specs=[
                pl.BlockSpec((1, C, TN), lambda b, n: (b, 0, n)),   # x tile
                pl.BlockSpec((B * C, 1), lambda b, n: (0, 0)),      # z columns (untiled)
                pl.BlockSpec((fsize, C), lambda b, n: (0, 0)),      # wf1
                pl.BlockSpec((fsize, 1), lambda b, n: (0, 0)),      # bf1
                pl.BlockSpec((C, fsize), lambda b, n: (0, 0)),      # wf2
                pl.BlockSpec((C, 5), lambda b, n: (0, 0)),          # packed vecs
            ],
            out_specs=pl.BlockSpec((1, C, TN), lambda b, n: (b, 0, n)),
        ),
        compiler_params=pltpu.CompilerParams(
            dimension_semantics=("parallel", "parallel"),
            vmem_limit_bytes=32 * 1024 * 1024,
        ),
    )(x, z_flat, wf1, bf1_col, wf2, cvec)

    if Np != N:
        out = out[:, :, :N]
    # (B, C, N) -> (B, C, H, W): free reshape, already NCHW.
    return out.reshape(B, C, H, W)


def cross_attention_ref(x_nchw, ce, p):
    # pure-JAX reference mirroring the PyTorch forward (full attention path,
    # so it also validates the algebraic simplification used in the kernel).
    B, C, H, W = x_nchw.shape
    x = jnp.transpose(x_nchw, (0, 2, 3, 1)).astype(jnp.float32)   # (B,H,W,C)
    q = x @ p["wq"].T + p["bq"]                                   # (B,H,W,qs)
    q = q.reshape(B, H * W, -1)
    k = (ce @ p["wk"].T + p["bk"])[:, :, None]                    # (B,qs,1)
    v = (ce @ p["wv"].T + p["bv"])[:, None, :]                    # (B,1,vs)
    attn = jnp.matmul(q, k) / math.sqrt(q.shape[-1])
    attn = jax.nn.softmax(attn, axis=-1)
    z = jnp.matmul(attn, v)
    z = z @ p["wz"].T + p["bz"]
    z = z.reshape(B, H, W, C)

    def ln(v_, g, b, eps=1e-5):
        mu = jnp.mean(v_, axis=-1, keepdims=True)
        var = jnp.mean((v_ - mu) ** 2, axis=-1, keepdims=True)
        return (v_ - mu) * jax.lax.rsqrt(var + eps) * g + b

    z = ln(z + x, p["g1"], p["be1"])
    h = jnp.maximum(z @ p["wf1"].T + p["bf1"], 0.0)
    ff = h @ p["wf2"].T + p["bf2"]
    out = ln(ff + z, p["g2"], p["be2"])
    return jnp.transpose(out, (0, 3, 1, 2))


if __name__ == "__main__":
    # small shapes consistent with the module
    B, C, H, W = 2, 16, 8, 8
    qsize, vsize, fsize, E = 8, 8, 32, 12

    key = jax.random.PRNGKey(0)
    ks = jax.random.split(key, 16)

    def init(k, shape, scale=0.1):
        return jax.random.normal(k, shape, dtype=jnp.float32) * scale

    params = {
        "wq": init(ks[0], (qsize, C)), "bq": init(ks[1], (qsize,)),
        "wk": init(ks[2], (qsize, E)), "bk": init(ks[3], (qsize,)),
        "wv": init(ks[4], (vsize, E)), "bv": init(ks[5], (vsize,)),
        "wz": init(ks[6], (C, vsize)), "bz": init(ks[7], (C,)),
        "g1": jnp.ones((C,), jnp.float32), "be1": jnp.zeros((C,), jnp.float32),
        "wf1": init(ks[8], (fsize, C)), "bf1": init(ks[9], (fsize,)),
        "wf2": init(ks[10], (C, fsize)), "bf2": init(ks[11], (C,)),
        "g2": jnp.ones((C,), jnp.float32), "be2": jnp.zeros((C,), jnp.float32),
    }

    x = jax.random.normal(ks[12], (B, C, H, W), dtype=jnp.float32)
    ce = jax.random.normal(ks[13], (B, E), dtype=jnp.float32)

    out = cross_attention_pallas(x, ce, params)
    out = jax.block_until_ready(out)

    ref = cross_attention_ref(x, ce, params)
    np.testing.assert_allclose(np.asarray(out), np.asarray(ref),
                               atol=1e-4, rtol=1e-4)

    print("KERNEL_OK")
</pallas_src>

<mosaic_0001>
module attributes {stable_mosaic.version = 11 : i64} {
  func.func @cross_attention_kernel(%arg0: i32, %arg1: i32, %arg2: memref<1x16x128xf32, #tpu.memory_space<vmem>>, %arg3: memref<32x1xf32, #tpu.memory_space<vmem>>, %arg4: memref<32x16xf32, #tpu.memory_space<vmem>>, %arg5: memref<32x1xf32, #tpu.memory_space<vmem>>, %arg6: memref<16x32xf32, #tpu.memory_space<vmem>>, %arg7: memref<16x5xf32, #tpu.memory_space<vmem>>, %arg8: memref<1x16x128xf32, #tpu.memory_space<vmem>>) attributes {dimension_semantics = [#tpu.dimension_semantics<parallel>, #tpu.dimension_semantics<parallel>], iteration_bounds = array<i64: 2, 1>, scalar_prefetch = 0 : i64, scratch_operands = 0 : i64, tpu.core_type = #tpu.core_type<tc>, window_params = [{transform_indices = @transform_0, window_bounds = array<i64: 1, 16, 128>}, {pipeline_mode = #tpu.pipeline_mode<synchronous>, transform_indices = @transform_1, window_bounds = array<i64: 32, 1>}, {pipeline_mode = #tpu.pipeline_mode<synchronous>, transform_indices = @transform_2, window_bounds = array<i64: 32, 16>}, {pipeline_mode = #tpu.pipeline_mode<synchronous>, transform_indices = @transform_3, window_bounds = array<i64: 32, 1>}, {pipeline_mode = #tpu.pipeline_mode<synchronous>, transform_indices = @transform_4, window_bounds = array<i64: 16, 32>}, {pipeline_mode = #tpu.pipeline_mode<synchronous>, transform_indices = @transform_5, window_bounds = array<i64: 16, 5>}, {transform_indices = @transform_6, window_bounds = array<i64: 1, 16, 128>}]} {
    %c0 = arith.constant 0 : index
    %c0_0 = arith.constant 0 : index
    %c0_1 = arith.constant 0 : index
    %0 = vector.load %arg2[%c0, %c0_0, %c0_1] : memref<1x16x128xf32, #tpu.memory_space<vmem>>, vector<1x16x128xf32>
    %1 = vector.shape_cast %0 : vector<1x16x128xf32> to vector<16x128xf32>
    %c16_i32 = arith.constant 16 : i32
    %2 = arith.muli %arg0, %c16_i32 : i32
    %3 = tpu.assume_multiple %2, 8 : i32
    %4 = arith.index_cast %3 : i32 to index
    %c0_2 = arith.constant 0 : index
    %5 = vector.load %arg3[%4, %c0_2] : memref<32x1xf32, #tpu.memory_space<vmem>>, vector<16x1xf32>
    %c0_3 = arith.constant 0 : index
    %c0_4 = arith.constant 0 : index
    %6 = vector.load %arg7[%c0_3, %c0_4] : memref<16x5xf32, #tpu.memory_space<vmem>>, vector<16x1xf32>
    %c0_5 = arith.constant 0 : index
    %c1 = arith.constant 1 : index
    %7 = vector.load %arg7[%c0_5, %c1] : memref<16x5xf32, #tpu.memory_space<vmem>>, vector<16x1xf32>
    %c0_6 = arith.constant 0 : index
    %c2 = arith.constant 2 : index
    %8 = vector.load %arg7[%c0_6, %c2] : memref<16x5xf32, #tpu.memory_space<vmem>>, vector<16x1xf32>
    %c0_7 = arith.constant 0 : index
    %c3 = arith.constant 3 : index
    %9 = vector.load %arg7[%c0_7, %c3] : memref<16x5xf32, #tpu.memory_space<vmem>>, vector<16x1xf32>
    %c0_8 = arith.constant 0 : index
    %c4 = arith.constant 4 : index
    %10 = vector.load %arg7[%c0_8, %c4] : memref<16x5xf32, #tpu.memory_space<vmem>>, vector<16x1xf32>
    %cst = arith.constant 1.000000e+00 : f32
    %11 = vector.broadcast %cst : f32 to vector<1x16xf32>
    %12 = vector.broadcast %5 : vector<16x1xf32> to vector<16x128xf32>
    %13 = arith.addf %1, %12 : vector<16x128xf32>
    %cst_9 = arith.constant dense<0.000000e+00> : vector<1x128xf32>
    %14 = tpu.matmul %11, %13, %cst_9 {dimension_numbers = #tpu.dot_dimension_numbers<[1], [0], [0], [1], [0, 0, 1, 1], [], []>} : vector<1x16xf32>, vector<16x128xf32>, vector<1x128xf32> -> vector<1x128xf32>
    %15 = arith.mulf %13, %13 : vector<16x128xf32>
    %cst_10 = arith.constant dense<0.000000e+00> : vector<1x128xf32>
    %16 = tpu.matmul %11, %15, %cst_10 {dimension_numbers = #tpu.dot_dimension_numbers<[1], [0], [0], [1], [0, 0, 1, 1], [], []>} : vector<1x16xf32>, vector<16x128xf32>, vector<1x128xf32> -> vector<1x128xf32>
    %cst_11 = arith.constant 6.250000e-02 : f32
    %17 = vector.broadcast %cst_11 : f32 to vector<1x128xf32>
    %18 = arith.mulf %14, %17 : vector<1x128xf32>
    %cst_12 = arith.constant 6.250000e-02 : f32
    %19 = vector.broadcast %cst_12 : f32 to vector<1x128xf32>
    %20 = arith.mulf %16, %19 : vector<1x128xf32>
    %21 = arith.mulf %18, %18 : vector<1x128xf32>
    %22 = arith.subf %20, %21 : vector<1x128xf32>
    %cst_13 = arith.constant 0.000000e+00 : f32
    %23 = vector.broadcast %cst_13 : f32 to vector<1x128xf32>
    %24 = arith.maximumf %22, %23 : vector<1x128xf32>
    %25 = vector.broadcast %18 : vector<1x128xf32> to vector<16x128xf32>
    %26 = arith.subf %13, %25 : vector<16x128xf32>
    %cst_14 = arith.constant 9.99999974E-6 : f32
    %27 = vector.broadcast %cst_14 : f32 to vector<1x128xf32>
    %28 = arith.addf %24, %27 : vector<1x128xf32>
    %29 = math.rsqrt %28 : vector<1x128xf32>
    %30 = vector.broadcast %29 : vector<1x128xf32> to vector<16x128xf32>
    %31 = arith.mulf %26, %30 : vector<16x128xf32>
    %32 = vector.broadcast %6 : vector<16x1xf32> to vector<16x128xf32>
    %33 = arith.mulf %31, %32 : vector<16x128xf32>
    %34 = vector.broadcast %7 : vector<16x1xf32> to vector<16x128xf32>
    %35 = arith.addf %33, %34 : vector<16x128xf32>
    %c0_15 = arith.constant 0 : index
    %c0_16 = arith.constant 0 : index
    %36 = vector.load %arg4[%c0_15, %c0_16] : memref<32x16xf32, #tpu.memory_space<vmem>>, vector<32x16xf32>
    %cst_17 = arith.constant dense<0.000000e+00> : vector<32x128xf32>
    %37 = tpu.matmul %36, %35, %cst_17 {dimension_numbers = #tpu.dot_dimension_numbers<[1], [0], [0], [1], [0, 0, 1, 1], [], []>} : vector<32x16xf32>, vector<16x128xf32>, vector<32x128xf32> -> vector<32x128xf32>
    %c0_18 = arith.constant 0 : index
    %c0_19 = arith.constant 0 : index
    %38 = vector.load %arg5[%c0_18, %c0_19] : memref<32x1xf32, #tpu.memory_space<vmem>>, vector<32x1xf32>
    %39 = vector.broadcast %38 : vector<32x1xf32> to vector<32x128xf32>
    %40 = arith.addf %37, %39 : vector<32x128xf32>
    %cst_20 = arith.constant 0.000000e+00 : f32
    %41 = vector.broadcast %cst_20 : f32 to vector<32x128xf32>
    %42 = arith.maximumf %40, %41 : vector<32x128xf32>
    %c0_21 = arith.constant 0 : index
    %c0_22 = arith.constant 0 : index
    %43 = vector.load %arg6[%c0_21, %c0_22] : memref<16x32xf32, #tpu.memory_space<vmem>>, vector<16x32xf32>
    %cst_23 = arith.constant dense<0.000000e+00> : vector<16x128xf32>
    %44 = tpu.matmul %43, %42, %cst_23 {dimension_numbers = #tpu.dot_dimension_numbers<[1], [0], [0], [1], [0, 0, 1, 1], [], []>} : vector<16x32xf32>, vector<32x128xf32>, vector<16x128xf32> -> vector<16x128xf32>
    %45 = vector.broadcast %8 : vector<16x1xf32> to vector<16x128xf32>
    %46 = arith.addf %44, %45 : vector<16x128xf32>
    %47 = arith.addf %46, %35 : vector<16x128xf32>
    %cst_24 = arith.constant dense<0.000000e+00> : vector<1x128xf32>
    %48 = tpu.matmul %11, %47, %cst_24 {dimension_numbers = #tpu.dot_dimension_numbers<[1], [0], [0], [1], [0, 0, 1, 1], [], []>} : vector<1x16xf32>, vector<16x128xf32>, vector<1x128xf32> -> vector<1x128xf32>
    %49 = arith.mulf %47, %47 : vector<16x128xf32>
    %cst_25 = arith.constant dense<0.000000e+00> : vector<1x128xf32>
    %50 = tpu.matmul %11, %49, %cst_25 {dimension_numbers = #tpu.dot_dimension_numbers<[1], [0], [0], [1], [0, 0, 1, 1], [], []>} : vector<1x16xf32>, vector<16x128xf32>, vector<1x128xf32> -> vector<1x128xf32>
    %cst_26 = arith.constant 6.250000e-02 : f32
    %51 = vector.broadcast %cst_26 : f32 to vector<1x128xf32>
    %52 = arith.mulf %48, %51 : vector<1x128xf32>
    %cst_27 = arith.constant 6.250000e-02 : f32
    %53 = vector.broadcast %cst_27 : f32 to vector<1x128xf32>
    %54 = arith.mulf %50, %53 : vector<1x128xf32>
    %55 = arith.mulf %52, %52 : vector<1x128xf32>
    %56 = arith.subf %54, %55 : vector<1x128xf32>
    %cst_28 = arith.constant 0.000000e+00 : f32
    %57 = vector.broadcast %cst_28 : f32 to vector<1x128xf32>
    %58 = arith.maximumf %56, %57 : vector<1x128xf32>
    %59 = vector.broadcast %52 : vector<1x128xf32> to vector<16x128xf32>
    %60 = arith.subf %47, %59 : vector<16x128xf32>
    %cst_29 = arith.constant 9.99999974E-6 : f32
    %61 = vector.broadcast %cst_29 : f32 to vector<1x128xf32>
    %62 = arith.addf %58, %61 : vector<1x128xf32>
    %63 = math.rsqrt %62 : vector<1x128xf32>
    %64 = vector.broadcast %63 : vector<1x128xf32> to vector<16x128xf32>
    %65 = arith.mulf %60, %64 : vector<16x128xf32>
    %66 = vector.broadcast %9 : vector<16x1xf32> to vector<16x128xf32>
    %67 = arith.mulf %65, %66 : vector<16x128xf32>
    %68 = vector.broadcast %10 : vector<16x1xf32> to vector<16x128xf32>
    %69 = arith.addf %67, %68 : vector<16x128xf32>
    %c0_30 = arith.constant 0 : index
    %c0_31 = arith.constant 0 : index
    %c0_32 = arith.constant 0 : index
    %70 = vector.load %arg8[%c0_30, %c0_31, %c0_32] : memref<1x16x128xf32, #tpu.memory_space<vmem>>, vector<1x16x128xf32>
    %71 = vector.shape_cast %70 : vector<1x16x128xf32> to vector<16x128xf32>
    %72 = vector.shape_cast %69 : vector<16x128xf32> to vector<1x16x128xf32>
    tpu.vector_store %arg8[%c0_30, %c0_31, %c0_32], %72 {strides = array<i32>} : memref<1x16x128xf32, #tpu.memory_space<vmem>>, vector<1x16x128xf32>,
    return
  }
  func.func @transform_0(%arg0: i32, %arg1: i32) -> (i32, i32, i32) {
    %c0_i32 = arith.constant 0 : i32
    %c0_i32_0 = arith.constant 0 : i32
    return %arg0, %c0_i32, %arg1 : i32, i32, i32
  }
  func.func @transform_1(%arg0: i32, %arg1: i32) -> (i32, i32) {
    %c0_i32 = arith.constant 0 : i32
    %c0_i32_0 = arith.constant 0 : i32
    %c0_i32_1 = arith.constant 0 : i32
    return %c0_i32, %c0_i32_0 : i32, i32
  }
  func.func @transform_2(%arg0: i32, %arg1: i32) -> (i32, i32) {
    %c0_i32 = arith.constant 0 : i32
    %c0_i32_0 = arith.constant 0 : i32
    %c0_i32_1 = arith.constant 0 : i32
    return %c0_i32, %c0_i32_0 : i32, i32
  }
  func.func @transform_3(%arg0: i32, %arg1: i32) -> (i32, i32) {
    %c0_i32 = arith.constant 0 : i32
    %c0_i32_0 = arith.constant 0 : i32
    %c0_i32_1 = arith.constant 0 : i32
    return %c0_i32, %c0_i32_0 : i32, i32
  }
  func.func @transform_4(%arg0: i32, %arg1: i32) -> (i32, i32) {
    %c0_i32 = arith.constant 0 : i32
    %c0_i32_0 = arith.constant 0 : i32
    %c0_i32_1 = arith.constant 0 : i32
    return %c0_i32, %c0_i32_0 : i32, i32
  }
  func.func @transform_5(%arg0: i32, %arg1: i32) -> (i32, i32) {
    %c0_i32 = arith.constant 0 : i32
    %c0_i32_0 = arith.constant 0 : i32
    %c0_i32_1 = arith.constant 0 : i32
    return %c0_i32, %c0_i32_0 : i32, i32
  }
  func.func @transform_6(%arg0: i32, %arg1: i32) -> (i32, i32, i32) {
    %c0_i32 = arith.constant 0 : i32
    %c0_i32_0 = arith.constant 0 : i32
    return %arg0, %c0_i32, %arg1 : i32, i32, i32
  }
}

</mosaic_0001>

<llo_original>
// kernel: tpu_custom_call.1
$region0: #{tpu_custom_call.1}
  #allocation0 [shape = 'u32[]', space=smem, size = 0x4, offset = 0x4, fixed_abs, tag = 'smem constant byte address 0x4 - core index']
  #allocation1 [shape = 'u32[144,128]{1,0:T(1,128)}', space=vmem, size = 0x12000, scoped, tag = 'internal scratch']
  %s0 = inlined_call_operand.vmem [shape: f32[2,16,128], index: 0, kind: input, shape index: {}]
  %s1 = inlined_call_operand.vmem [shape: f32[32,1], index: 1, kind: input, shape index: {}]
  %s2 = inlined_call_operand.vmem [shape: f32[32,16], index: 2, kind: input, shape index: {}]
  %s3 = inlined_call_operand.vmem [shape: f32[32,1], index: 3, kind: input, shape index: {}]
  %s4 = inlined_call_operand.vmem [shape: f32[16,32], index: 4, kind: input, shape index: {}]
  %s5 = inlined_call_operand.vmem [shape: f32[16,5], index: 5, kind: input, shape index: {}]
  %s6 = inlined_call_operand.hbm [shape: f32[2,16,128], index: 6, kind: output, shape index: {}]
  %s7 = sld [smem:[#allocation0]]
  $region57: #{tpu_custom_call.1} parent=0
    _
  %s9 = ssub.s32 1, %s7
  %s10 = scalar_select 0, %s9, %s7
  $region1: #{tpu_custom_call.1} parent=0
    #allocation2 [shape = 'u8[16384]{0}', space=vmem, size = 0x4000, scoped, tag = 'output window, operand 0']
    #allocation3 [shape = 's32[2]{0}', space=sflag, size = 0x8, scoped, tag = 'scoped memory for tpu_custom_call.1']
    %11 = vsyncpa [#allocation3], 0
    %s12 = scalar_lea.sflag [#allocation3], 1
    %13 = vsyncpa %s12, 0
    loop: start=0, step=1, limit=4
    $region2: #{tpu_custom_call.1} parent=1 // loop_pre_header
      _
    $region3: #{tpu_custom_call.1} parent=1 // loop_header
      %s15 = sphi 0, %s19
      %p16 = scmp.ge.s32.totalorder %s15, 4
      %s22 = sphi 0, %s34
      %s23 = sphi 0, %s30
      %s24 = sphi 0, %s22
      %s25 = sphi 0, %s23
      %s26 = sphi 0, %s24
      %s27 = sphi 0, %s25
      %s39 = sphi 0, %s41
      %s42 = sphi 0, %s39
      %s43 = sphi 0, %s42
      %s59 = sphi 0, %s43
      %s63 = sphi 0, %s63
      %s65 = sphi 0, %s63
      %s66 = sphi 0, %s65
      %s80 = sphi 0, %s66
      %s84 = sphi 0, %s84
      %s86 = sphi 0, %s84
      %s87 = sphi 0, %s86
      %s101 = sphi 0, %s87
      %s105 = sphi 0, %s105
      %s107 = sphi 0, %s105
      %s108 = sphi 0, %s107
      %s122 = sphi 0, %s108
      %s126 = sphi 0, %s126
      %s128 = sphi 0, %s126
      %s129 = sphi 0, %s128
      %s143 = sphi 0, %s129
      %s147 = sphi 0, %s147
      %s149 = sphi 0, %s147
      %s150 = sphi 0, %s149
      %s164 = sphi 0, %s150
      %s172 = sphi 0, %s174
      %s175 = sphi 0, %s172
      %s176 = sphi 0, %s175
      %s192 = sphi 0, %s176
    $region4: #{tpu_custom_call.1} parent=1 // loop_header_branch
      %18 = sbr.rel (%p16) target = $region8
    $region5: #{tpu_custom_call.1} parent=1 // loop_body
      %s20 = ssub.s32 %s15, 1
      %s21 = ssub.s32 %s15, 2
      %s28 = sadd.s32 1, %s23
      %p29 = scmp.ge.s32.totalorder %s28, 1
      %s30 = scalar_select %p29, 0, %s28
      %s31 = sadd.s32 1, %s22
      %s32 = scalar_select %p29, %s31, %s22
      %p33 = scmp.ge.s32.totalorder %s32, 2
      %s34 = scalar_select %p33, 0, %s32
      %s35 = ssub.s32 %s22, %s34
      %s36 = ssub.s32 %s23, %s30
      %s37 = sor.u32 %s35, %s36
      %p38 = scmp.eq.s32.totalorder %s37, 0
      %s40 = sadd.s32 %s39, 1
      %s41 = scalar_select %p38, %s39, %s40
      %p44 = pneg %p38
      %p45 = scmp.eq.s32.totalorder %s15, 1
      %p46 = por %p44, %p45
      %p47 = scmp.ne.s32.totalorder %s39, %s42
      %p48 = scmp.eq.s32.totalorder %s15, 0
      %p49 = por %p47, %p48
      %p50 = scmp.ne.s32.totalorder %s39, %s42
      %p51 = scmp.eq.s32.totalorder %s20, 1
      %p52 = por %p50, %p51
      %p53 = scmp.ne.s32.totalorder %s42, %s43
      %p54 = scmp.eq.s32.totalorder %s20, 0
      %p55 = por %p53, %p54
      %p56 = scmp.ne.s32.totalorder %s42, %s43
      %p57 = scmp.eq.s32.totalorder %s21, 1
      %p58 = por %p56, %p57
      %p60 = scmp.ne.s32.totalorder %s43, %s59
      %p61 = scmp.eq.s32.totalorder %s21, 0
      %p62 = por %p60, %p61
      %s64 = sadd.s32 %s63, 1
      %p67 = scmp.eq.s32.totalorder %s15, 1
      %p68 = scmp.ne.s32.totalorder %s63, %s65
      %p69 = scmp.eq.s32.totalorder %s15, 0
      %p70 = por %p68, %p69
      %p71 = scmp.ne.s32.totalorder %s63, %s65
      %p72 = scmp.eq.s32.totalorder %s20, 1
      %p73 = por %p71, %p72
      %p74 = scmp.ne.s32.totalorder %s65, %s66
      %p75 = scmp.eq.s32.totalorder %s20, 0
      %p76 = por %p74, %p75
      %p77 = scmp.ne.s32.totalorder %s65, %s66
      %p78 = scmp.eq.s32.totalorder %s21, 1
      %p79 = por %p77, %p78
      %p81 = scmp.ne.s32.totalorder %s66, %s80
      %p82 = scmp.eq.s32.totalorder %s21, 0
      %p83 = por %p81, %p82
      %s85 = sadd.s32 %s84, 1
      %p88 = scmp.eq.s32.totalorder %s15, 1
      %p89 = scmp.ne.s32.totalorder %s84, %s86
      %p90 = scmp.eq.s32.totalorder %s15, 0
      %p91 = por %p89, %p90
      %p92 = scmp.ne.s32.totalorder %s84, %s86
      %p93 = scmp.eq.s32.totalorder %s20, 1
      %p94 = por %p92, %p93
      %p95 = scmp.ne.s32.totalorder %s86, %s87
      %p96 = scmp.eq.s32.totalorder %s20, 0
      %p97 = por %p95, %p96
      %p98 = scmp.ne.s32.totalorder %s86, %s87
      %p99 = scmp.eq.s32.totalorder %s21, 1
      %p100 = por %p98, %p99
      %p102 = scmp.ne.s32.totalorder %s87, %s101
      %p103 = scmp.eq.s32.totalorder %s21, 0
      %p104 = por %p102, %p103
      %s106 = sadd.s32 %s105, 1
      %p109 = scmp.eq.s32.totalorder %s15, 1
      %p110 = scmp.ne.s32.totalorder %s105, %s107
      %p111 = scmp.eq.s32.totalorder %s15, 0
      %p112 = por %p110, %p111
      %p113 = scmp.ne.s32.totalorder %s105, %s107
      %p114 = scmp.eq.s32.totalorder %s20, 1
      %p115 = por %p113, %p114
      %p116 = scmp.ne.s32.totalorder %s107, %s108
      %p117 = scmp.eq.s32.totalorder %s20, 0
      %p118 = por %p116, %p117
      %p119 = scmp.ne.s32.totalorder %s107, %s108
      %p120 = scmp.eq.s32.totalorder %s21, 1
      %p121 = por %p119, %p120
      %p123 = scmp.ne.s32.totalorder %s108, %s122
      %p124 = scmp.eq.s32.totalorder %s21, 0
      %p125 = por %p123, %p124
      %s127 = sadd.s32 %s126, 1
      %p130 = scmp.eq.s32.totalorder %s15, 1
      %p131 = scmp.ne.s32.totalorder %s126, %s128
      %p132 = scmp.eq.s32.totalorder %s15, 0
      %p133 = por %p131, %p132
      %p134 = scmp.ne.s32.totalorder %s126, %s128
      %p135 = scmp.eq.s32.totalorder %s20, 1
      %p136 = por %p134, %p135
      %p137 = scmp.ne.s32.totalorder %s128, %s129
      %p138 = scmp.eq.s32.totalorder %s20, 0
      %p139 = por %p137, %p138
      %p140 = scmp.ne.s32.totalorder %s128, %s129
      %p141 = scmp.eq.s32.totalorder %s21, 1
      %p142 = por %p140, %p141
      %p144 = scmp.ne.s32.totalorder %s129, %s143
      %p145 = scmp.eq.s32.totalorder %s21, 0
      %p146 = por %p144, %p145
      %s148 = sadd.s32 %s147, 1
      %p151 = scmp.eq.s32.totalorder %s15, 1
      %p152 = scmp.ne.s32.totalorder %s147, %s149
      %p153 = scmp.eq.s32.totalorder %s15, 0
      %p154 = por %p152, %p153
      %p155 = scmp.ne.s32.totalorder %s147, %s149
      %p156 = scmp.eq.s32.totalorder %s20, 1
      %p157 = por %p155, %p156
      %p158 = scmp.ne.s32.totalorder %s149, %s150
      %p159 = scmp.eq.s32.totalorder %s20, 0
      %p160 = por %p158, %p159
      %p161 = scmp.ne.s32.totalorder %s149, %s150
      %p162 = scmp.eq.s32.totalorder %s21, 1
      %p163 = por %p161, %p162
      %p165 = scmp.ne.s32.totalorder %s150, %s164
      %p166 = scmp.eq.s32.totalorder %s21, 0
      %p167 = por %p165, %p166
      %s168 = ssub.s32 %s22, %s34
      %s169 = ssub.s32 %s23, %s30
      %s170 = sor.u32 %s168, %s169
      %p171 = scmp.eq.s32.totalorder %s170, 0
      %s173 = sadd.s32 %s172, 1
      %s174 = scalar_select %p171, %s172, %s173
      %p177 = pneg %p171
      %p178 = scmp.eq.s32.totalorder %s15, 1
      %p179 = por %p177, %p178
      %p180 = scmp.ne.s32.totalorder %s172, %s175
      %p181 = scmp.eq.s32.totalorder %s15, 0
      %p182 = por %p180, %p181
      %p183 = scmp.ne.s32.totalorder %s172, %s175
      %p184 = scmp.eq.s32.totalorder %s20, 1
      %p185 = por %p183, %p184
      %p186 = scmp.ne.s32.totalorder %s175, %s176
      %p187 = scmp.eq.s32.totalorder %s20, 0
      %p188 = por %p186, %p187
      %p189 = scmp.ne.s32.totalorder %s175, %s176
      %p190 = scmp.eq.s32.totalorder %s21, 1
      %p191 = por %p189, %p190
      %p193 = scmp.ne.s32.totalorder %s176, %s192
      %p194 = scmp.eq.s32.totalorder %s21, 0
      %p195 = por %p193, %p194
      %p196 = scmp.le.s32.totalorder 1, %s15
      %p197 = scmp.lt.s32.totalorder %s15, 3
      %p198 = pnand %p196, %p197
      %p199 = pneg %p198
      // Predicated region
      $region9: #{tpu_custom_call.1} parent=5 // pred_check
        _
      $region10: #{tpu_custom_call.1} parent=5 // pred_check_branch
        %201 = sbr.rel (%p198) target = $region12
      $region11: #{tpu_custom_call.1} parent=5 // pred_region
        %s202 = ssub.s32 %s15, 1
        // Predicated region
        $region13: #{tpu_custom_call.1} parent=11 // pred_check
          %p203 = pneg %p76
        $region14: #{tpu_custom_call.1} parent=11 // pred_check_branch
          %205 = sbr.rel (%p203) target = $region16
        $region15: #{tpu_custom_call.1} parent=11 // pred_region
          _
        $region16: #{tpu_custom_call.1} parent=11 // pred_fallthru
          _
        // Predicated region
        $region17: #{tpu_custom_call.1} parent=11 // pred_check
          %p206 = pneg %p97
        $region18: #{tpu_custom_call.1} parent=11 // pred_check_branch
          %208 = sbr.rel (%p206) target = $region20
        $region19: #{tpu_custom_call.1} parent=11 // pred_region
          _
        $region20: #{tpu_custom_call.1} parent=11 // pred_fallthru
          _
        // Predicated region
        $region21: #{tpu_custom_call.1} parent=11 // pred_check
          %p209 = pneg %p118
        $region22: #{tpu_custom_call.1} parent=11 // pred_check_branch
          %211 = sbr.rel (%p209) target = $region24
        $region23: #{tpu_custom_call.1} parent=11 // pred_region
          _
        $region24: #{tpu_custom_call.1} parent=11 // pred_fallthru
          _
        // Predicated region
        $region25: #{tpu_custom_call.1} parent=11 // pred_check
          %p212 = pneg %p139
        $region26: #{tpu_custom_call.1} parent=11 // pred_check_branch
          %214 = sbr.rel (%p212) target = $region28
        $region27: #{tpu_custom_call.1} parent=11 // pred_region
          _
        $region28: #{tpu_custom_call.1} parent=11 // pred_fallthru
          _
        // Predicated region
        $region29: #{tpu_custom_call.1} parent=11 // pred_check
          %p215 = pneg %p160
        $region30: #{tpu_custom_call.1} parent=11 // pred_check_branch
          %217 = sbr.rel (%p215) target = $region32
        $region31: #{tpu_custom_call.1} parent=11 // pred_region
          _
        $region32: #{tpu_custom_call.1} parent=11 // pred_fallthru
          _
      $region12: #{tpu_custom_call.1} parent=5 // pred_fallthru
        _
      %p218 = scmp.lt.s32.totalorder %s15, 2
      // Predicated region
      $region33: #{tpu_custom_call.1} parent=5 // pred_check
        %p219 = pneg %p218
      $region34: #{tpu_custom_call.1} parent=5 // pred_check_branch
        %221 = sbr.rel (%p219) target = $region36
      $region35: #{tpu_custom_call.1} parent=5 // pred_region
        // Predicated region
        $region37: #{tpu_custom_call.1} parent=35 // pred_check
          %p222 = pneg %p49
        $region38: #{tpu_custom_call.1} parent=35 // pred_check_branch
          %224 = sbr.rel (%p222) target = $region40
        $region39: #{tpu_custom_call.1} parent=35 // pred_region
          %p225 = scmp.lt.s32.totalorder %s22, 1
          %s226 = scalar_select %p225, %s22, 1
          %p227 = scmp.lt.s32.totalorder %s23, 0
          %s228 = scalar_select %p227, %s23, 0
          %s229 = smul.addr %s226, 2
          %s230 = sadd.s32 %s228, %s229
          %s231 = smul.addr %s230, 8
          %s232 = scalar_lea.vmem %s0, %s231
        $region40: #{tpu_custom_call.1} parent=35 // pred_fallthru
          _
      $region36: #{tpu_custom_call.1} parent=5 // pred_fallthru
        _
      %p233 = scmp.le.s32.totalorder 1, %s15
      %p234 = scmp.lt.s32.totalorder %s15, 3
      %p235 = pnand %p233, %p234
      %p236 = pneg %p235
      // Predicated region
      $region41: #{tpu_custom_call.1} parent=5 // pred_check
        _
      $region42: #{tpu_custom_call.1} parent=5 // pred_check_branch
        %238 = sbr.rel (%p235) target = $region44
      $region43: #{tpu_custom_call.1} parent=5 // pred_region
        %s239 = ssub.s32 %s15, 1
        %p240 = scmp.lt.s32.totalorder %s24, 1
        %s241 = scalar_select %p240, %s24, 1
        %p242 = scmp.lt.s32.totalorder %s25, 0
        %s243 = scalar_select %p242, %s25, 0
        %s244 = smul.addr %s241, 2
        %s245 = sadd.s32 %s243, %s244
        %s246 = smul.addr %s245, 8
        %s247 = scalar_lea.vmem %s0, %s246
        %p248 = pneg %p55
        %p249 = pneg %p52
        %p250 = pneg %p76
        %p251 = pneg %p73
        %p252 = pneg %p97
        %p253 = pneg %p94
        %p254 = pneg %p118
        %p255 = pneg %p115
        %p256 = pneg %p139
        %p257 = pneg %p136
        %p258 = pneg %p160
        %p259 = pneg %p157
        %p260 = pneg %p188
        %p261 = pneg %p185
        %s262 = sand.u32 %s175, 1
        %s263 = scalar_lea.sflag [#allocation3], %s262
        %s264 = sand.u32 %s175, 1
        %s265 = smul.addr %s264, 16
        %s266 = scalar_lea.vmem [#allocation2], %s265
        %p267 = scmp.lt.s32.totalorder %s24, 1
        %s268 = scalar_select %p267, %s24, 1
        %p269 = scmp.lt.s32.totalorder %s25, 0
        %s270 = scalar_select %p269, %s25, 0
        %s271 = smul.addr %s268, 2
        %s272 = sadd.s32 %s270, %s271
        %s273 = smul.addr %s272, 8
        %s274 = scalar_lea.vmem %s0, %s273
        %v275 = vld [vmem:[%s274] sm:$0xff]
        %v276 = vld [vmem:[%s274 + $0x8] sm:$0xff]
        %s277 = smul.u32 %s24, 16
        %s278 = scalar_lea.vmem %s1, %s277
        %v279 = vld [vmem:[%s278] sm:$0xff]
        %v280 = vld [vmem:[%s278 + $0x8] sm:$0xff]
        %v281 = vld [vmem:[%s5] sm:$0xff]
        %v282 = vld [vmem:[%s5 + $0x8] sm:$0xff]
        %284 = vset.pattern.permute.xlu0 0
        %285 = vperm.xlu0 %284, %v279
        %v286 = vpop.permute.xlu0 %285
        %289 = vset.pattern.permute.xlu0 0
        %290 = vperm.xlu0 %289, %v280
        %v291 = vpop.permute.xlu0 %290
        %v293 = vadd.f32 %v275, %v286
        %v294 = vadd.f32 %v276, %v291
        %vm295 = vcmask 130048
        %v297 = vsel %vm295, 1.0, 0
        %299 = vmatprep.subr.mxu0 0.0
        %300 = vmatpush1.msra.mxu0 0.0
        %301 = vmatprep.subr.mxu0 0.0
        %302 = vmatpush1.msra.mxu0 0.0
        %303 = vmatprep.subr.mxu0 0.0
        %304 = vmatpush1.msra.mxu0 0.0
        %305 = vmatprep.subr.mxu0 0.0
        %306 = vmatpush1.msra.mxu0 0.0
        %307 = vmatprep.subr.mxu0 0.0
        %308 = vmatpush1.msra.mxu0 0.0
        %309 = vmatprep.subr.mxu0 0.0
        %310 = vmatpush1.msra.mxu0 0.0
        %311 = vmatprep.subr.mxu0 0.0
        %312 = vmatpush1.msra.mxu0 0.0
        %313 = vmatprep.subr.mxu0 0.0
        %314 = vmatpush1.msra.mxu0 0.0
        %315 = vmatprep.subr.mxu0 0.0
        %316 = vmatpush1.msra.mxu0 0.0
        %317 = vmatprep.subr.mxu0 0.0
        %318 = vmatpush1.msra.mxu0 0.0
        %319 = vmatprep.subr.mxu0 0.0
        %320 = vmatpush1.msra.mxu0 0.0
        %321 = vmatprep.subr.mxu0 0.0
        %322 = vmatpush1.msra.mxu0 0.0
        %323 = vmatprep.subr.mxu0 0.0
        %324 = vmatpush1.msra.mxu0 0.0
        %325 = vmatprep.subr.mxu0 0.0
        %326 = vmatpush1.msra.mxu0 0.0
        %327 = vmatprep.subr.mxu0 0.0
        %328 = vmatpush1.msra.mxu0 %v294
        %329 = vmatprep.subr.mxu0 0.0
        %330 = vmatpush1.msra.mxu0 %v293
        %331 = vmatprep.subr.mxu0 0.0
        %332 = vmatpush2.msra.mxu0 0.0
        %333 = vmatprep.subr.mxu0 0.0
        %334 = vmatpush2.msra.mxu0 0.0
        %335 = vmatprep.subr.mxu0 0.0
        %336 = vmatpush2.msra.mxu0 0.0
        %337 = vmatprep.subr.mxu0 0.0
        %338 = vmatpush2.msra.mxu0 0.0
        %339 = vmatprep.subr.mxu0 0.0
        %340 = vmatpush2.msra.mxu0 0.0
        %341 = vmatprep.subr.mxu0 0.0
        %342 = vmatpush2.msra.mxu0 0.0
        %343 = vmatprep.subr.mxu0 0.0
        %344 = vmatpush2.msra.mxu0 0.0
        %345 = vmatprep.subr.mxu0 0.0
        %346 = vmatpush2.msra.mxu0 0.0
        %347 = vmatprep.subr.mxu0 0.0
        %348 = vmatpush2.msra.mxu0 0.0
        %349 = vmatprep.subr.mxu0 0.0
        %350 = vmatpush2.msra.mxu0 0.0
        %351 = vmatprep.subr.mxu0 0.0
        %352 = vmatpush2.msra.mxu0 0.0
        %353 = vmatprep.subr.mxu0 0.0
        %354 = vmatpush2.msra.mxu0 0.0
        %355 = vmatprep.subr.mxu0 0.0
        %356 = vmatpush2.msra.mxu0 0.0
        %357 = vmatprep.subr.mxu0 0.0
        %358 = vmatpush2.msra.mxu0 0.0
        %359 = vmatprep.subr.mxu0 0.0
        %360 = vmatpush2.msra.mxu0 0.0
        %361 = vmatprep.subr.mxu0 0.0
        %362 = vmatpush2.msra.mxu0 0.0
        %363 = vmatprep.mubr.f32.mxu0 0.0
        %364 = vmatmul.mubr.f32.gmra.mxu0 %v297
        %v365 = vpop.f32.mrf.mxu0
        %v366 = vadd.f32 0.0, %v365
        %v367 = vpop.f32.mrf.mxu0
        %368 = vdwg.mxu0
        %v369 = vmul.f32 %v293, %v293
        %v370 = vmul.f32 %v294, %v294
        %371 = vmatprep.subr.mxu0 0.0
        %372 = vmatpush1.msra.mxu0 0.0
        %373 = vmatprep.subr.mxu0 0.0
        %374 = vmatpush1.msra.mxu0 0.0
        %375 = vmatprep.subr.mxu0 0.0
        %376 = vmatpush1.msra.mxu0 0.0
        %377 = vmatprep.subr.mxu0 0.0
        %378 = vmatpush1.msra.mxu0 0.0
        %379 = vmatprep.subr.mxu0 0.0
        %380 = vmatpush1.msra.mxu0 0.0
        %381 = vmatprep.subr.mxu0 0.0
        %382 = vmatpush1.msra.mxu0 0.0
        %383 = vmatprep.subr.mxu0 0.0
        %384 = vmatpush1.msra.mxu0 0.0
        %385 = vmatprep.subr.mxu0 0.0
        %386 = vmatpush1.msra.mxu0 0.0
        %387 = vmatprep.subr.mxu0 0.0
        %388 = vmatpush1.msra.mxu0 0.0
        %389 = vmatprep.subr.mxu0 0.0
        %390 = vmatpush1.msra.mxu0 0.0
        %391 = vmatprep.subr.mxu0 0.0
        %392 = vmatpush1.msra.mxu0 0.0
        %393 = vmatprep.subr.mxu0 0.0
        %394 = vmatpush1.msra.mxu0 0.0
        %395 = vmatprep.subr.mxu0 0.0
        %396 = vmatpush1.msra.mxu0 0.0
        %397 = vmatprep.subr.mxu0 0.0
        %398 = vmatpush1.msra.mxu0 0.0
        %399 = vmatprep.subr.mxu0 0.0
        %400 = vmatpush1.msra.mxu0 %v370
        %401 = vmatprep.subr.mxu0 0.0
        %402 = vmatpush1.msra.mxu0 %v369
        %403 = vmatprep.subr.mxu0 0.0
        %404 = vmatpush2.msra.mxu0 0.0
        %405 = vmatprep.subr.mxu0 0.0
        %406 = vmatpush2.msra.mxu0 0.0
        %407 = vmatprep.subr.mxu0 0.0
        %408 = vmatpush2.msra.mxu0 0.0
        %409 = vmatprep.subr.mxu0 0.0
        %410 = vmatpush2.msra.mxu0 0.0
        %411 = vmatprep.subr.mxu0 0.0
        %412 = vmatpush2.msra.mxu0 0.0
        %413 = vmatprep.subr.mxu0 0.0
        %414 = vmatpush2.msra.mxu0 0.0
        %415 = vmatprep.subr.mxu0 0.0
        %416 = vmatpush2.msra.mxu0 0.0
        %417 = vmatprep.subr.mxu0 0.0
        %418 = vmatpush2.msra.mxu0 0.0
        %419 = vmatprep.subr.mxu0 0.0
        %420 = vmatpush2.msra.mxu0 0.0
        %421 = vmatprep.subr.mxu0 0.0
        %422 = vmatpush2.msra.mxu0 0.0
        %423 = vmatprep.subr.mxu0 0.0
        %424 = vmatpush2.msra.mxu0 0.0
        %425 = vmatprep.subr.mxu0 0.0
        %426 = vmatpush2.msra.mxu0 0.0
        %427 = vmatprep.subr.mxu0 0.0
        %428 = vmatpush2.msra.mxu0 0.0
        %429 = vmatprep.subr.mxu0 0.0
        %430 = vmatpush2.msra.mxu0 0.0
        %431 = vmatprep.subr.mxu0 0.0
        %432 = vmatpush2.msra.mxu0 0.0
        %433 = vmatprep.subr.mxu0 0.0
        %434 = vmatpush2.msra.mxu0 0.0
        %435 = vmatprep.mubr.f32.mxu0 0.0
        %436 = vmatmul.mubr.f32.gmra.mxu0 %v297
        %v437 = vpop.f32.mrf.mxu0
        %v438 = vadd.f32 0.0, %v437
        %v439 = vpop.f32.mrf.mxu0
        %440 = vdwg.mxu0
        %v441 = vmul.f32 %v366, 0.0625
        %v442 = vmul.f32 %v438, 0.0625
        %v443 = vmul.f32 %v441, %v441
        %v444 = vsub.f32 %v442, %v443
        %v445 = vmax.f32 %v444, 0.0
        %v446 = vlaneseq
        %v447 = vshrl.u32 %v446, 7
        %v448 = vsub.s32 0, %v447
        %v449 = vrot.slane %v441, %v448
        %v450 = vsub.f32 %v293, %v449
        %v451 = vsub.f32 %v294, %v449
        %v452 = vadd.f32 %v445, 1e-05
        %v453 = vrsqrt.pop %v452
        %v454 = vlaneseq
        %v455 = vshrl.u32 %v454, 7
        %v456 = vsub.s32 0, %v455
        %v457 = vrot.slane %v453, %v456
        %v458 = vmul.f32 %v450, %v457
        %v459 = vmul.f32 %v451, %v457
        %461 = vset.pattern.permute.xlu0 0
        %462 = vperm.xlu0 %461, %v281
        %v463 = vpop.permute.xlu0 %462
        %466 = vset.pattern.permute.xlu0 0
        %467 = vperm.xlu0 %466, %v282
        %v468 = vpop.permute.xlu0 %467
        %v470 = vmul.f32 %v458, %v463
        %v471 = vmul.f32 %v459, %v468
        %472 = vset.pattern.permute.xlu0 1
        %473 = vperm.xlu0 %472, %v281
        %v474 = vpop.permute.xlu0 %473
        %476 = vset.pattern.permute.xlu0 1
        %477 = vperm.xlu0 %476, %v282
        %v478 = vpop.permute.xlu0 %477
        %v480 = vadd.f32 %v470, %v474
        %v481 = vadd.f32 %v471, %v478
        %v482 = vld [vmem:[%s2] sm:$0xff]
        %v483 = vld [vmem:[%s2 + $0x8] sm:$0xff]
        %v484 = vld [vmem:[%s2 + $0x10] sm:$0xff]
        %v485 = vld [vmem:[%s2 + $0x18] sm:$0xff]
        %v486 = vld [vmem:[%s3] sm:$0xff]
        %v487 = vld [vmem:[%s3 + $0x8] sm:$0xff]
        %v488 = vld [vmem:[%s3 + $0x10] sm:$0xff]
        %v489 = vld [vmem:[%s3 + $0x18] sm:$0xff]
        %491 = vset.pattern.permute.xlu0 0
        %492 = vperm.xlu0 %491, %v486
        %v493 = vpop.permute.xlu0 %492
        %496 = vset.pattern.permute.xlu0 0
        %497 = vperm.xlu0 %496, %v487
        %v498 = vpop.permute.xlu0 %497
        %501 = vset.pattern.permute.xlu0 0
        %502 = vperm.xlu0 %501, %v488
        %v503 = vpop.permute.xlu0 %502
        %506 = vset.pattern.permute.xlu0 0
        %507 = vperm.xlu0 %506, %v489
        %v508 = vpop.permute.xlu0 %507
        %v511 = vsel %vm295, %v482, 0
        %v514 = vsel %vm295, %v483, 0
        %v517 = vsel %vm295, %v484, 0
        %v520 = vsel %vm295, %v485, 0
        %522 = vmatprep.subr.mxu0 0.0
        %523 = vmatpush1.msra.mxu0 0.0
        %524 = vmatprep.subr.mxu0 0.0
        %525 = vmatpush1.msra.mxu0 0.0
        %526 = vmatprep.subr.mxu0 0.0
        %527 = vmatpush1.msra.mxu0 0.0
        %528 = vmatprep.subr.mxu0 0.0
        %529 = vmatpush1.msra.mxu0 0.0
        %530 = vmatprep.subr.mxu0 0.0
        %531 = vmatpush1.msra.mxu0 0.0
        %532 = vmatprep.subr.mxu0 0.0
        %533 = vmatpush1.msra.mxu0 0.0
        %534 = vmatprep.subr.mxu0 0.0
        %535 = vmatpush1.msra.mxu0 0.0
        %536 = vmatprep.subr.mxu0 0.0
        %537 = vmatpush1.msra.mxu0 0.0
        %538 = vmatprep.subr.mxu0 0.0
        %539 = vmatpush1.msra.mxu0 0.0
        %540 = vmatprep.subr.mxu0 0.0
        %541 = vmatpush1.msra.mxu0 0.0
        %542 = vmatprep.subr.mxu0 0.0
        %543 = vmatpush1.msra.mxu0 0.0
        %544 = vmatprep.subr.mxu0 0.0
        %545 = vmatpush1.msra.mxu0 0.0
        %546 = vmatprep.subr.mxu0 0.0
        %547 = vmatpush1.msra.mxu0 0.0
        %548 = vmatprep.subr.mxu0 0.0
        %549 = vmatpush1.msra.mxu0 0.0
        %550 = vmatprep.subr.mxu0 0.0
        %551 = vmatpush1.msra.mxu0 %v481
        %552 = vmatprep.subr.mxu0 0.0
        %553 = vmatpush1.msra.mxu0 %v480
        %554 = vmatprep.subr.mxu0 0.0
        %555 = vmatpush2.msra.mxu0 0.0
        %556 = vmatprep.subr.mxu0 0.0
        %557 = vmatpush2.msra.mxu0 0.0
        %558 = vmatprep.subr.mxu0 0.0
        %559 = vmatpush2.msra.mxu0 0.0
        %560 = vmatprep.subr.mxu0 0.0
        %561 = vmatpush2.msra.mxu0 0.0
        %562 = vmatprep.subr.mxu0 0.0
        %563 = vmatpush2.msra.mxu0 0.0
        %564 = vmatprep.subr.mxu0 0.0
        %565 = vmatpush2.msra.mxu0 0.0
        %566 = vmatprep.subr.mxu0 0.0
        %567 = vmatpush2.msra.mxu0 0.0
        %568 = vmatprep.subr.mxu0 0.0
        %569 = vmatpush2.msra.mxu0 0.0
        %570 = vmatprep.subr.mxu0 0.0
        %571 = vmatpush2.msra.mxu0 0.0
        %572 = vmatprep.subr.mxu0 0.0
        %573 = vmatpush2.msra.mxu0 0.0
        %574 = vmatprep.subr.mxu0 0.0
        %575 = vmatpush2.msra.mxu0 0.0
        %576 = vmatprep.subr.mxu0 0.0
        %577 = vmatpush2.msra.mxu0 0.0
        %578 = vmatprep.subr.mxu0 0.0
        %579 = vmatpush2.msra.mxu0 0.0
        %580 = vmatprep.subr.mxu0 0.0
        %581 = vmatpush2.msra.mxu0 0.0
        %582 = vmatprep.subr.mxu0 0.0
        %583 = vmatpush2.msra.mxu0 0.0
        %584 = vmatprep.subr.mxu0 0.0
        %585 = vmatpush2.msra.mxu0 0.0
        %586 = vmatprep.mubr.f32.mxu0 0.0
        %587 = vmatmul.mubr.f32.gmra.mxu0 %v511
        %v588 = vpop.f32.mrf.mxu0
        %v589 = vadd.f32 %v493, %v588
        %v590 = vpop.f32.mrf.mxu0
        %591 = vmatprep.mubr.f32.mxu0 0.0
        %592 = vmatmul.mubr.f32.gmra.mxu0 %v514
        %v593 = vpop.f32.mrf.mxu0
        %v594 = vadd.f32 %v498, %v593
        %v595 = vpop.f32.mrf.mxu0
        %596 = vmatprep.mubr.f32.mxu0 0.0
        %597 = vmatmul.mubr.f32.gmra.mxu0 %v517
        %v598 = vpop.f32.mrf.mxu0
        %v599 = vadd.f32 %v503, %v598
        %v600 = vpop.f32.mrf.mxu0
        %601 = vmatprep.mubr.f32.mxu0 0.0
        %602 = vmatmul.mubr.f32.gmra.mxu0 %v520
        %v603 = vpop.f32.mrf.mxu0
        %v604 = vadd.f32 %v508, %v603
        %v605 = vpop.f32.mrf.mxu0
        %606 = vdwg.mxu0
        %v607 = vmax.f32 %v589, 0.0
        %v608 = vmax.f32 %v594, 0.0
        %v609 = vmax.f32 %v599, 0.0
        %v610 = vmax.f32 %v604, 0.0
        %v611 = vld [vmem:[%s4] sm:$0xff]
        %v612 = vld [vmem:[%s4 + $0x8] sm:$0xff]
        %613 = vset.pattern.permute.xlu0 2
        %614 = vperm.xlu0 %613, %v281
        %v615 = vpop.permute.xlu0 %614
        %617 = vset.pattern.permute.xlu0 2
        %618 = vperm.xlu0 %617, %v282
        %v619 = vpop.permute.xlu0 %618
        %vm621 = vcmask 261120
        %v623 = vsel %vm621, %v611, 0
        %v626 = vsel %vm621, %v612, 0
        %628 = vmatprep.subr.mxu0 0.0
        %629 = vmatpush1.msra.mxu0 0.0
        %630 = vmatprep.subr.mxu0 0.0
        %631 = vmatpush1.msra.mxu0 0.0
        %632 = vmatprep.subr.mxu0 0.0
        %633 = vmatpush1.msra.mxu0 0.0
        %634 = vmatprep.subr.mxu0 0.0
        %635 = vmatpush1.msra.mxu0 0.0
        %636 = vmatprep.subr.mxu0 0.0
        %637 = vmatpush1.msra.mxu0 0.0
        %638 = vmatprep.subr.mxu0 0.0
        %639 = vmatpush1.msra.mxu0 0.0
        %640 = vmatprep.subr.mxu0 0.0
        %641 = vmatpush1.msra.mxu0 0.0
        %642 = vmatprep.subr.mxu0 0.0
        %643 = vmatpush1.msra.mxu0 0.0
        %644 = vmatprep.subr.mxu0 0.0
        %645 = vmatpush1.msra.mxu0 0.0
        %646 = vmatprep.subr.mxu0 0.0
        %647 = vmatpush1.msra.mxu0 0.0
        %648 = vmatprep.subr.mxu0 0.0
        %649 = vmatpush1.msra.mxu0 0.0
        %650 = vmatprep.subr.mxu0 0.0
        %651 = vmatpush1.msra.mxu0 0.0
        %652 = vmatprep.subr.mxu0 0.0
        %653 = vmatpush1.msra.mxu0 %v610
        %654 = vmatprep.subr.mxu0 0.0
        %655 = vmatpush1.msra.mxu0 %v609
        %656 = vmatprep.subr.mxu0 0.0
        %657 = vmatpush1.msra.mxu0 %v608
        %658 = vmatprep.subr.mxu0 0.0
        %659 = vmatpush1.msra.mxu0 %v607
        %660 = vmatprep.subr.mxu0 0.0
        %661 = vmatpush2.msra.mxu0 0.0
        %662 = vmatprep.subr.mxu0 0.0
        %663 = vmatpush2.msra.mxu0 0.0
        %664 = vmatprep.subr.mxu0 0.0
        %665 = vmatpush2.msra.mxu0 0.0
        %666 = vmatprep.subr.mxu0 0.0
        %667 = vmatpush2.msra.mxu0 0.0
        %668 = vmatprep.subr.mxu0 0.0
        %669 = vmatpush2.msra.mxu0 0.0
        %670 = vmatprep.subr.mxu0 0.0
        %671 = vmatpush2.msra.mxu0 0.0
        %672 = vmatprep.subr.mxu0 0.0
        %673 = vmatpush2.msra.mxu0 0.0
        %674 = vmatprep.subr.mxu0 0.0
        %675 = vmatpush2.msra.mxu0 0.0
        %676 = vmatprep.subr.mxu0 0.0
        %677 = vmatpush2.msra.mxu0 0.0
        %678 = vmatprep.subr.mxu0 0.0
        %679 = vmatpush2.msra.mxu0 0.0
        %680 = vmatprep.subr.mxu0 0.0
        %681 = vmatpush2.msra.mxu0 0.0
        %682 = vmatprep.subr.mxu0 0.0
        %683 = vmatpush2.msra.mxu0 0.0
        %684 = vmatprep.subr.mxu0 0.0
        %685 = vmatpush2.msra.mxu0 0.0
        %686 = vmatprep.subr.mxu0 0.0
        %687 = vmatpush2.msra.mxu0 0.0
        %688 = vmatprep.subr.mxu0 0.0
        %689 = vmatpush2.msra.mxu0 0.0
        %690 = vmatprep.subr.mxu0 0.0
        %691 = vmatpush2.msra.mxu0 0.0
        %692 = vmatprep.mubr.f32.mxu0 0.0
        %693 = vmatmul.mubr.f32.gmra.mxu0 %v623
        %v694 = vpop.f32.mrf.mxu0
        %v695 = vadd.f32 %v615, %v694
        %v696 = vpop.f32.mrf.mxu0
        %697 = vmatprep.mubr.f32.mxu0 0.0
        %698 = vmatmul.mubr.f32.gmra.mxu0 %v626
        %v699 = vpop.f32.mrf.mxu0
        %v700 = vadd.f32 %v619, %v699
        %v701 = vpop.f32.mrf.mxu0
        %702 = vdwg.mxu0
        %v703 = vadd.f32 %v695, %v480
        %v704 = vadd.f32 %v700, %v481
        %705 = vmatprep.subr.mxu0 0.0
        %706 = vmatpush1.msra.mxu0 0.0
        %707 = vmatprep.subr.mxu0 0.0
        %708 = vmatpush1.msra.mxu0 0.0
        %709 = vmatprep.subr.mxu0 0.0
        %710 = vmatpush1.msra.mxu0 0.0
        %711 = vmatprep.subr.mxu0 0.0
        %712 = vmatpush1.msra.mxu0 0.0
        %713 = vmatprep.subr.mxu0 0.0
        %714 = vmatpush1.msra.mxu0 0.0
        %715 = vmatprep.subr.mxu0 0.0
        %716 = vmatpush1.msra.mxu0 0.0
        %717 = vmatprep.subr.mxu0 0.0
        %718 = vmatpush1.msra.mxu0 0.0
        %719 = vmatprep.subr.mxu0 0.0
        %720 = vmatpush1.msra.mxu0 0.0
        %721 = vmatprep.subr.mxu0 0.0
        %722 = vmatpush1.msra.mxu0 0.0
        %723 = vmatprep.subr.mxu0 0.0
        %724 = vmatpush1.msra.mxu0 0.0
        %725 = vmatprep.subr.mxu0 0.0
        %726 = vmatpush1.msra.mxu0 0.0
        %727 = vmatprep.subr.mxu0 0.0
        %728 = vmatpush1.msra.mxu0 0.0
        %729 = vmatprep.subr.mxu0 0.0
        %730 = vmatpush1.msra.mxu0 0.0
        %731 = vmatprep.subr.mxu0 0.0
        %732 = vmatpush1.msra.mxu0 0.0
        %733 = vmatprep.subr.mxu0 0.0
        %734 = vmatpush1.msra.mxu0 %v704
        %735 = vmatprep.subr.mxu0 0.0
        %736 = vmatpush1.msra.mxu0 %v703
        %737 = vmatprep.subr.mxu0 0.0
        %738 = vmatpush2.msra.mxu0 0.0
        %739 = vmatprep.subr.mxu0 0.0
        %740 = vmatpush2.msra.mxu0 0.0
        %741 = vmatprep.subr.mxu0 0.0
        %742 = vmatpush2.msra.mxu0 0.0
        %743 = vmatprep.subr.mxu0 0.0
        %744 = vmatpush2.msra.mxu0 0.0
        %745 = vmatprep.subr.mxu0 0.0
        %746 = vmatpush2.msra.mxu0 0.0
        %747 = vmatprep.subr.mxu0 0.0
        %748 = vmatpush2.msra.mxu0 0.0
        %749 = vmatprep.subr.mxu0 0.0
        %750 = vmatpush2.msra.mxu0 0.0
        %751 = vmatprep.subr.mxu0 0.0
        %752 = vmatpush2.msra.mxu0 0.0
        %753 = vmatprep.subr.mxu0 0.0
        %754 = vmatpush2.msra.mxu0 0.0
        %755 = vmatprep.subr.mxu0 0.0
        %756 = vmatpush2.msra.mxu0 0.0
        %757 = vmatprep.subr.mxu0 0.0
        %758 = vmatpush2.msra.mxu0 0.0
        %759 = vmatprep.subr.mxu0 0.0
        %760 = vmatpush2.msra.mxu0 0.0
        %761 = vmatprep.subr.mxu0 0.0
        %762 = vmatpush2.msra.mxu0 0.0
        %763 = vmatprep.subr.mxu0 0.0
        %764 = vmatpush2.msra.mxu0 0.0
        %765 = vmatprep.subr.mxu0 0.0
        %766 = vmatpush2.msra.mxu0 0.0
        %767 = vmatprep.subr.mxu0 0.0
        %768 = vmatpush2.msra.mxu0 0.0
        %769 = vmatprep.mubr.f32.mxu0 0.0
        %770 = vmatmul.mubr.f32.gmra.mxu0 %v297
        %v771 = vpop.f32.mrf.mxu0
        %v772 = vadd.f32 0.0, %v771
        %v773 = vpop.f32.mrf.mxu0
        %774 = vdwg.mxu0
        %v775 = vmul.f32 %v703, %v703
        %v776 = vmul.f32 %v704, %v704
        %777 = vmatprep.subr.mxu0 0.0
        %778 = vmatpush1.msra.mxu0 0.0
        %779 = vmatprep.subr.mxu0 0.0
        %780 = vmatpush1.msra.mxu0 0.0
        %781 = vmatprep.subr.mxu0 0.0
        %782 = vmatpush1.msra.mxu0 0.0
        %783 = vmatprep.subr.mxu0 0.0
        %784 = vmatpush1.msra.mxu0 0.0
        %785 = vmatprep.subr.mxu0 0.0
        %786 = vmatpush1.msra.mxu0 0.0
        %787 = vmatprep.subr.mxu0 0.0
        %788 = vmatpush1.msra.mxu0 0.0
        %789 = vmatprep.subr.mxu0 0.0
        %790 = vmatpush1.msra.mxu0 0.0
        %791 = vmatprep.subr.mxu0 0.0
        %792 = vmatpush1.msra.mxu0 0.0
        %793 = vmatprep.subr.mxu0 0.0
        %794 = vmatpush1.msra.mxu0 0.0
        %795 = vmatprep.subr.mxu0 0.0
        %796 = vmatpush1.msra.mxu0 0.0
        %797 = vmatprep.subr.mxu0 0.0
        %798 = vmatpush1.msra.mxu0 0.0
        %799 = vmatprep.subr.mxu0 0.0
        %800 = vmatpush1.msra.mxu0 0.0
        %801 = vmatprep.subr.mxu0 0.0
        %802 = vmatpush1.msra.mxu0 0.0
        %803 = vmatprep.subr.mxu0 0.0
        %804 = vmatpush1.msra.mxu0 0.0
        %805 = vmatprep.subr.mxu0 0.0
        %806 = vmatpush1.msra.mxu0 %v776
        %807 = vmatprep.subr.mxu0 0.0
        %808 = vmatpush1.msra.mxu0 %v775
        %809 = vmatprep.subr.mxu0 0.0
        %810 = vmatpush2.msra.mxu0 0.0
        %811 = vmatprep.subr.mxu0 0.0
        %812 = vmatpush2.msra.mxu0 0.0
        %813 = vmatprep.subr.mxu0 0.0
        %814 = vmatpush2.msra.mxu0 0.0
        %815 = vmatprep.subr.mxu0 0.0
        %816 = vmatpush2.msra.mxu0 0.0
        %817 = vmatprep.subr.mxu0 0.0
        %818 = vmatpush2.msra.mxu0 0.0
        %819 = vmatprep.subr.mxu0 0.0
        %820 = vmatpush2.msra.mxu0 0.0
        %821 = vmatprep.subr.mxu0 0.0
        %822 = vmatpush2.msra.mxu0 0.0
        %823 = vmatprep.subr.mxu0 0.0
        %824 = vmatpush2.msra.mxu0 0.0
        %825 = vmatprep.subr.mxu0 0.0
        %826 = vmatpush2.msra.mxu0 0.0
        %827 = vmatprep.subr.mxu0 0.0
        %828 = vmatpush2.msra.mxu0 0.0
        %829 = vmatprep.subr.mxu0 0.0
        %830 = vmatpush2.msra.mxu0 0.0
        %831 = vmatprep.subr.mxu0 0.0
        %832 = vmatpush2.msra.mxu0 0.0
        %833 = vmatprep.subr.mxu0 0.0
        %834 = vmatpush2.msra.mxu0 0.0
        %835 = vmatprep.subr.mxu0 0.0
        %836 = vmatpush2.msra.mxu0 0.0
        %837 = vmatprep.subr.mxu0 0.0
        %838 = vmatpush2.msra.mxu0 0.0
        %839 = vmatprep.subr.mxu0 0.0
        %840 = vmatpush2.msra.mxu0 0.0
        %841 = vmatprep.mubr.f32.mxu0 0.0
        %842 = vmatmul.mubr.f32.gmra.mxu0 %v297
        %v843 = vpop.f32.mrf.mxu0
        %v844 = vadd.f32 0.0, %v843
        %v845 = vpop.f32.mrf.mxu0
        %846 = vdwg.mxu0
        %v847 = vmul.f32 %v772, 0.0625
        %v848 = vmul.f32 %v844, 0.0625
        %v849 = vmul.f32 %v847, %v847
        %v850 = vsub.f32 %v848, %v849
        %v851 = vmax.f32 %v850, 0.0
        %v852 = vlaneseq
        %v853 = vshrl.u32 %v852, 7
        %v854 = vsub.s32 0, %v853
        %v855 = vrot.slane %v847, %v854
        %v856 = vsub.f32 %v703, %v855
        %v857 = vsub.f32 %v704, %v855
        %v858 = vadd.f32 %v851, 1e-05
        %v859 = vrsqrt.pop %v858
        %v860 = vlaneseq
        %v861 = vshrl.u32 %v860, 7
        %v862 = vsub.s32 0, %v861
        %v863 = vrot.slane %v859, %v862
        %v864 = vmul.f32 %v856, %v863
        %v865 = vmul.f32 %v857, %v863
        %866 = vset.pattern.permute.xlu0 3
        %867 = vperm.xlu0 %866, %v281
        %v868 = vpop.permute.xlu0 %867
        %870 = vset.pattern.permute.xlu0 3
        %871 = vperm.xlu0 %870, %v282
        %v872 = vpop.permute.xlu0 %871
        %v874 = vmul.f32 %v864, %v868
        %v875 = vmul.f32 %v865, %v872
        %876 = vset.pattern.permute.xlu0 4
        %877 = vperm.xlu0 %876, %v281
        %v878 = vpop.permute.xlu0 %877
        %880 = vset.pattern.permute.xlu0 4
        %881 = vperm.xlu0 %880, %v282
        %v882 = vpop.permute.xlu0 %881
        %v884 = vadd.f32 %v874, %v878
        %v885 = vadd.f32 %v875, %v882
        %886 = vst [vmem:[%s266] sm:$0xff] %v884
        %887 = vst [vmem:[%s266 + $0x8] sm:$0xff] %v885
        %s888 = sand.u32 %s175, 1
        %s889 = scalar_lea.sflag [#allocation3], %s888
        %s890 = sand.u32 %s175, 1
        %s891 = smul.addr %s890, 16
        %s892 = scalar_lea.vmem [#allocation2], %s891
        // Predicated region
        $region45: #{tpu_custom_call.1} parent=43 // pred_check
          %p893 = pneg %p185
        $region46: #{tpu_custom_call.1} parent=43 // pred_check_branch
          %895 = sbr.rel (%p893) target = $region48
        $region47: #{tpu_custom_call.1} parent=43 // pred_region
          %s897 = ssub.s32 256, 256
          %898 = vsyncadd %s889, %s897
          %s899 = smul.addr %s24, 2
          %s900 = sadd.s32 %s25, %s899
          %s901 = smul.addr %s900, 128
          %s902 = scalar_lea.hbm %s6, %s901
          %s903 = sshll.u32 %s892, 4
          %s904 = int_to_ptr.vmem [resolvable:$true] %s903
          %909 = dma.vmem_to_hbm [thread:$0]  %s904, 256, %s902, %s889, 128, 128, 8
        $region48: #{tpu_custom_call.1} parent=43 // pred_fallthru
          _
      $region44: #{tpu_custom_call.1} parent=5 // pred_fallthru
        _
      %p910 = scmp.le.s32.totalorder 2, %s15
      // Predicated region
      $region49: #{tpu_custom_call.1} parent=5 // pred_check
        %p911 = pneg %p910
      $region50: #{tpu_custom_call.1} parent=5 // pred_check_branch
        %913 = sbr.rel (%p911) target = $region52
      $region51: #{tpu_custom_call.1} parent=5 // pred_region
        %s914 = ssub.s32 %s15, 2
        // Predicated region
        $region53: #{tpu_custom_call.1} parent=51 // pred_check
          %p915 = pneg %p191
        $region54: #{tpu_custom_call.1} parent=51 // pred_check_branch
          %917 = sbr.rel (%p915) target = $region56
        $region55: #{tpu_custom_call.1} parent=51 // pred_region
          %s918 = sand.u32 %s176, 1
          %s919 = scalar_lea.sflag [#allocation3], %s918
          %s920 = sand.u32 %s176, 1
          %s921 = smul.addr %s920, 16
          %s922 = scalar_lea.vmem [#allocation2], %s921
          %923 = dma.done %s919, 256
        $region56: #{tpu_custom_call.1} parent=51 // pred_fallthru
          _
      $region52: #{tpu_custom_call.1} parent=5 // pred_fallthru
        _
    $region6: #{tpu_custom_call.1} parent=1 // loop_footer
      %s19 = sadd.s32 1, %s15
    $region7: #{tpu_custom_call.1} parent=1 // loop_footer_branch
      %14 = sbr.rel target = $region3
    $region8: #{tpu_custom_call.1} parent=1 // loop_exit
      _
    %924 = vsyncpa [#allocation3], 1
    %s925 = scalar_lea.sflag [#allocation3], 1
    %926 = vsyncpa %s925, 1

</llo_original>
